<compile_context>
chip_gen: v5e
topology: v5e:2x2
jax: 0.10.0
libtpu: 0.0.40
codegen_flags: <defaults>
</compile_context>

<pallas_src>
import functools

import jax
import jax.numpy as jnp
from jax.experimental import pallas as pl
from jax.experimental.pallas import tpu as pltpu


def _round_up(x: int, m: int) -> int:
    return ((x + m - 1) // m) * m


def _relunet_kernel(x_ref, w1_ref, b1_ref, w2_ref, b2_ref, w3_ref, b3_ref, o_ref):
    # x tile: [TB, D]; weights/biases resident across grid steps.
    # The input shift (x - 0.5) is pre-folded into b1 by the wrapper.
    h1 = jnp.dot(x_ref[...], w1_ref[...], preferred_element_type=jnp.float32) + b1_ref[...]
    h1 = jnp.maximum(h1, 0.0)                                     # relu(fc1(x - 0.5))
    h2 = jnp.dot(h1, w2_ref[...], preferred_element_type=jnp.float32) + b2_ref[...]
    h2 = jnp.maximum(h2, 0.0)                                     # relu(fc2(.))
    out = jnp.dot(h2, w3_ref[...], preferred_element_type=jnp.float32) + b3_ref[...]
    o_ref[...] = out.astype(o_ref.dtype)                          # fc3(.), no activation


@functools.partial(jax.jit, static_argnames=("tile_b",))
def relunet_forward(x, w1, b1, w2, b2, w3, b3, *, tile_b=None):
    B, D = x.shape
    H = w1.shape[1]          # 10 * ndim
    A = w3.shape[1]          # 2 * ndim (action_size)

    # Tile selection:
    #  - B <= 1024: one grid step holding the whole batch (block == full array, so no
    #    (8,128) constraint, and zero per-step overhead).
    #  - B  > 1024: at least two balanced steps (lets v7x use both TensorCores via the
    #    "parallel" axis), capped at 2048 rows so a step fits v5e's 16 MiB scoped VMEM.
    if tile_b is None:
        if B <= 1024:
            tile_b = B
        else:
            tile_b = min(2048, _round_up(pl.cdiv(B, 2), 256))
    else:
        tile_b = min(max(int(tile_b), 1), B)
        if tile_b < B and tile_b % 8 != 0:
            # Partial-batch blocks must have a sublane-aligned second-to-last dim.
            tile_b = min(_round_up(tile_b, 8), B)

    num_steps = pl.cdiv(B, tile_b)

    # Fold torch.sub(x, 0.5) into the first bias:  (x-0.5)@W1 + b1 == x@W1 + (b1 - 0.5*colsum(W1)).
    b1_eff = b1 - 0.5 * jnp.sum(w1, axis=0, keepdims=True)

    out = pl.pallas_call(
        _relunet_kernel,
        out_shape=jax.ShapeDtypeStruct((B, A), x.dtype),
        grid_spec=pltpu.PrefetchScalarGridSpec(
            num_scalar_prefetch=0,
            grid=(num_steps,),
            in_specs=[
                pl.BlockSpec((tile_b, D), lambda i: (i, 0)),   # x tile (pipelined)
                pl.BlockSpec((D, H), lambda i: (0, 0)),        # W1 (resident)
                pl.BlockSpec((1, H), lambda i: (0, 0)),        # b1 (shift folded in)
                pl.BlockSpec((H, H), lambda i: (0, 0)),        # W2
                pl.BlockSpec((1, H), lambda i: (0, 0)),        # b2
                pl.BlockSpec((H, A), lambda i: (0, 0)),        # W3
                pl.BlockSpec((1, A), lambda i: (0, 0)),        # b3
            ],
            out_specs=pl.BlockSpec((tile_b, A), lambda i: (i, 0)),
        ),
        compiler_params=pltpu.CompilerParams(
            dimension_semantics=("parallel",),   # shard a multi-step grid across v7x's 2 TCs
        ),
    )(x, w1, b1_eff, w2, b2, w3, b3)

    return out


def init_relunet_params(key, ndim, dtype=jnp.float32):
    """Deterministic init matching ReLUNet.__init__: normal(std=0.125) weights, zero bias.

    Weights are stored [in, out] (transposed w.r.t. PyTorch's [out, in]) so the kernel
    does x @ W.
    """
    hls = ndim * 10
    stdval = 0.125
    k1, k2, k3 = jax.random.split(key, 3)
    w1 = jax.random.normal(k1, (ndim, hls), dtype) * stdval
    w2 = jax.random.normal(k2, (hls, hls), dtype) * stdval
    w3 = jax.random.normal(k3, (hls, 2 * ndim), dtype) * stdval
    b1 = jnp.zeros((1, hls), dtype)
    b2 = jnp.zeros((1, hls), dtype)
    b3 = jnp.zeros((1, 2 * ndim), dtype)
    return w1, b1, w2, b2, w3, b3


def relunet_reference(x, w1, b1, w2, b2, w3, b3):
    x = x - 0.5
    x = jnp.maximum(x @ w1 + b1, 0.0)
    x = jnp.maximum(x @ w2 + b2, 0.0)
    return x @ w3 + b3


if __name__ == "__main__":
    ndim = 16          # feature dim  -> hidden = 160, action_size = 32

    key = jax.random.PRNGKey(0)
    kx1, kx2, kp = jax.random.split(key, 3)
    params = init_relunet_params(kp, ndim)

    # Case 1: small batch -> single grid step holding the whole batch.
    x_small = jax.random.normal(kx1, (16, ndim), jnp.float32)
    out_small = jax.block_until_ready(relunet_forward(x_small, *params))
    ref_small = relunet_reference(x_small, *params)
    assert out_small.shape == (16, 2 * ndim), out_small.shape
    assert jnp.allclose(out_small, ref_small, atol=1e-5, rtol=1e-5), "mismatch (small batch)"

    # Case 2: ragged batch with explicit tiling -> exercises the partial last block
    # (no wrapper-side padding or output slicing).
    x_ragged = jax.random.normal(kx2, (300, ndim), jnp.float32)
    out_ragged = jax.block_until_ready(relunet_forward(x_ragged, *params, tile_b=128))
    ref_ragged = relunet_reference(x_ragged, *params)
    assert out_ragged.shape == (300, 2 * ndim), out_ragged.shape
    assert jnp.allclose(out_ragged, ref_ragged, atol=1e-5, rtol=1e-5), "mismatch (ragged batch)"

    print("KERNEL_OK")
</pallas_src>

<mosaic_0001>
module attributes {stable_mosaic.version = 11 : i64} {
  func.func @_relunet_kernel(%arg0: i32, %arg1: memref<16x16xf32, #tpu.memory_space<vmem>>, %arg2: memref<16x160xf32, #tpu.memory_space<vmem>>, %arg3: memref<1x160xf32, #tpu.memory_space<vmem>>, %arg4: memref<160x160xf32, #tpu.memory_space<vmem>>, %arg5: memref<1x160xf32, #tpu.memory_space<vmem>>, %arg6: memref<160x32xf32, #tpu.memory_space<vmem>>, %arg7: memref<1x32xf32, #tpu.memory_space<vmem>>, %arg8: memref<16x32xf32, #tpu.memory_space<vmem>>) attributes {dimension_semantics = [#tpu.dimension_semantics<parallel>], iteration_bounds = array<i64: 1>, scalar_prefetch = 0 : i64, scratch_operands = 0 : i64, tpu.core_type = #tpu.core_type<tc>, window_params = [{transform_indices = @transform_0, window_bounds = array<i64: 16, 16>}, {pipeline_mode = #tpu.pipeline_mode<synchronous>, transform_indices = @transform_1, window_bounds = array<i64: 16, 160>}, {pipeline_mode = #tpu.pipeline_mode<synchronous>, transform_indices = @transform_2, window_bounds = array<i64: 1, 160>}, {pipeline_mode = #tpu.pipeline_mode<synchronous>, transform_indices = @transform_3, window_bounds = array<i64: 160, 160>}, {pipeline_mode = #tpu.pipeline_mode<synchronous>, transform_indices = @transform_4, window_bounds = array<i64: 1, 160>}, {pipeline_mode = #tpu.pipeline_mode<synchronous>, transform_indices = @transform_5, window_bounds = array<i64: 160, 32>}, {pipeline_mode = #tpu.pipeline_mode<synchronous>, transform_indices = @transform_6, window_bounds = array<i64: 1, 32>}, {transform_indices = @transform_7, window_bounds = array<i64: 16, 32>}]} {
    %c0 = arith.constant 0 : index
    %c0_0 = arith.constant 0 : index
    %0 = vector.load %arg1[%c0, %c0_0] : memref<16x16xf32, #tpu.memory_space<vmem>>, vector<16x16xf32>
    %c0_1 = arith.constant 0 : index
    %c0_2 = arith.constant 0 : index
    %1 = vector.load %arg2[%c0_1, %c0_2] : memref<16x160xf32, #tpu.memory_space<vmem>>, vector<16x160xf32>
    %cst = arith.constant dense<0.000000e+00> : vector<16x160xf32>
    %2 = tpu.matmul %0, %1, %cst {dimension_numbers = #tpu.dot_dimension_numbers<[1], [0], [0], [1], [0, 0, 1, 1], [], []>} : vector<16x16xf32>, vector<16x160xf32>, vector<16x160xf32> -> vector<16x160xf32>
    %c0_3 = arith.constant 0 : index
    %c0_4 = arith.constant 0 : index
    %3 = vector.load %arg3[%c0_3, %c0_4] : memref<1x160xf32, #tpu.memory_space<vmem>>, vector<1x160xf32>
    %4 = vector.broadcast %3 : vector<1x160xf32> to vector<16x160xf32>
    %5 = arith.addf %2, %4 : vector<16x160xf32>
    %cst_5 = arith.constant 0.000000e+00 : f32
    %6 = vector.broadcast %cst_5 : f32 to vector<16x160xf32>
    %7 = arith.maximumf %5, %6 : vector<16x160xf32>
    %c0_6 = arith.constant 0 : index
    %c0_7 = arith.constant 0 : index
    %8 = vector.load %arg4[%c0_6, %c0_7] : memref<160x160xf32, #tpu.memory_space<vmem>>, vector<160x160xf32>
    %cst_8 = arith.constant dense<0.000000e+00> : vector<16x160xf32>
    %9 = tpu.matmul %7, %8, %cst_8 {dimension_numbers = #tpu.dot_dimension_numbers<[1], [0], [0], [1], [0, 0, 1, 1], [], []>} : vector<16x160xf32>, vector<160x160xf32>, vector<16x160xf32> -> vector<16x160xf32>
    %c0_9 = arith.constant 0 : index
    %c0_10 = arith.constant 0 : index
    %10 = vector.load %arg5[%c0_9, %c0_10] : memref<1x160xf32, #tpu.memory_space<vmem>>, vector<1x160xf32>
    %11 = vector.broadcast %10 : vector<1x160xf32> to vector<16x160xf32>
    %12 = arith.addf %9, %11 : vector<16x160xf32>
    %cst_11 = arith.constant 0.000000e+00 : f32
    %13 = vector.broadcast %cst_11 : f32 to vector<16x160xf32>
    %14 = arith.maximumf %12, %13 : vector<16x160xf32>
    %c0_12 = arith.constant 0 : index
    %c0_13 = arith.constant 0 : index
    %15 = vector.load %arg6[%c0_12, %c0_13] : memref<160x32xf32, #tpu.memory_space<vmem>>, vector<160x32xf32>
    %cst_14 = arith.constant dense<0.000000e+00> : vector<16x32xf32>
    %16 = tpu.matmul %14, %15, %cst_14 {dimension_numbers = #tpu.dot_dimension_numbers<[1], [0], [0], [1], [0, 0, 1, 1], [], []>} : vector<16x160xf32>, vector<160x32xf32>, vector<16x32xf32> -> vector<16x32xf32>
    %c0_15 = arith.constant 0 : index
    %c0_16 = arith.constant 0 : index
    %17 = vector.load %arg7[%c0_15, %c0_16] : memref<1x32xf32, #tpu.memory_space<vmem>>, vector<1x32xf32>
    %18 = vector.broadcast %17 : vector<1x32xf32> to vector<16x32xf32>
    %19 = arith.addf %16, %18 : vector<16x32xf32>
    %c0_17 = arith.constant 0 : index
    %c0_18 = arith.constant 0 : index
    %20 = vector.load %arg8[%c0_17, %c0_18] : memref<16x32xf32, #tpu.memory_space<vmem>>, vector<16x32xf32>
    tpu.vector_store %arg8[%c0_17, %c0_18], %19 {strides = array<i32>} : memref<16x32xf32, #tpu.memory_space<vmem>>, vector<16x32xf32>,
    return
  }
  func.func @transform_0(%arg0: i32) -> (i32, i32) {
    %c0_i32 = arith.constant 0 : i32
    %c0_i32_0 = arith.constant 0 : i32
    return %arg0, %c0_i32 : i32, i32
  }
  func.func @transform_1(%arg0: i32) -> (i32, i32) {
    %c0_i32 = arith.constant 0 : i32
    %c0_i32_0 = arith.constant 0 : i32
    %c0_i32_1 = arith.constant 0 : i32
    return %c0_i32, %c0_i32_0 : i32, i32
  }
  func.func @transform_2(%arg0: i32) -> (i32, i32) {
    %c0_i32 = arith.constant 0 : i32
    %c0_i32_0 = arith.constant 0 : i32
    %c0_i32_1 = arith.constant 0 : i32
    return %c0_i32, %c0_i32_0 : i32, i32
  }
  func.func @transform_3(%arg0: i32) -> (i32, i32) {
    %c0_i32 = arith.constant 0 : i32
    %c0_i32_0 = arith.constant 0 : i32
    %c0_i32_1 = arith.constant 0 : i32
    return %c0_i32, %c0_i32_0 : i32, i32
  }
  func.func @transform_4(%arg0: i32) -> (i32, i32) {
    %c0_i32 = arith.constant 0 : i32
    %c0_i32_0 = arith.constant 0 : i32
    %c0_i32_1 = arith.constant 0 : i32
    return %c0_i32, %c0_i32_0 : i32, i32
  }
  func.func @transform_5(%arg0: i32) -> (i32, i32) {
    %c0_i32 = arith.constant 0 : i32
    %c0_i32_0 = arith.constant 0 : i32
    %c0_i32_1 = arith.constant 0 : i32
    return %c0_i32, %c0_i32_0 : i32, i32
  }
  func.func @transform_6(%arg0: i32) -> (i32, i32) {
    %c0_i32 = arith.constant 0 : i32
    %c0_i32_0 = arith.constant 0 : i32
    %c0_i32_1 = arith.constant 0 : i32
    return %c0_i32, %c0_i32_0 : i32, i32
  }
  func.func @transform_7(%arg0: i32) -> (i32, i32) {
    %c0_i32 = arith.constant 0 : i32
    %c0_i32_0 = arith.constant 0 : i32
    return %arg0, %c0_i32 : i32, i32
  }
}

</mosaic_0001>

<llo_original>
// kernel: sub.1
$region0: #{sub.1}
  #allocation0 [shape = 's32[1]{0}', space=sflag, size = 0x4, scoped, tag = 'scoped memory for sub.1']
  %s0 = inlined_call_operand.vmem [shape: f32[1,160], index: 0, kind: input, shape index: {}]
  %s1 = inlined_call_operand.vmem [shape: f32[1,160], index: 1, kind: input, shape index: {}]
  %s2 = inlined_call_operand.vmem [shape: f32[1,160], index: 2, kind: output, shape index: {}]
  %v3 = vld [vmem:[%s0] sm:$0x1]
  %v4 = vld [vmem:[%s1] sm:$0x1]
  %5 = xla_tuple %v3, %v4
  %6 = xla_tuple %5
  %v7 = vsub.f32 %v3, %v4
  %8 = xla_tuple %v7
  %9 = vst [vmem:[%s2] sm:$0x1] %v7
  %s10 = scalar_lea.vmem %s0, 1
  %v11 = vld [vmem:[%s10] sm:$0x1]
  %s12 = scalar_lea.vmem %s1, 1
  %v13 = vld [vmem:[%s12] sm:$0x1]
  %14 = xla_tuple %v11, %v13
  %15 = xla_tuple %14
  %v16 = vsub.f32 %v11, %v13
  %17 = xla_tuple %v16
  %s18 = scalar_lea.vmem %s2, 1
  %19 = vst [vmem:[%s18] sm:$0x1] %v16

// kernel: relunet_forward.1
$region0: #{relunet_forward.1}
  #allocation0 [shape = 'u32[]', space=smem, size = 0x4, offset = 0x4, fixed_abs, tag = 'smem constant byte address 0x4 - core index']
  #allocation1 [shape = 'u32[72,128]{1,0:T(1,128)}', space=vmem, size = 0x9000, scoped, tag = 'internal scratch']
  %s0 = inlined_call_operand.vmem [shape: f32[16,16], index: 0, kind: input, shape index: {}]
  %s1 = inlined_call_operand.vmem [shape: f32[16,160], index: 1, kind: input, shape index: {}]
  %s2 = inlined_call_operand.vmem [shape: f32[1,160], index: 2, kind: input, shape index: {}]
  %s3 = inlined_call_operand.hbm [shape: f32[160,160], index: 3, kind: input, shape index: {}]
  %s4 = inlined_call_operand.vmem [shape: f32[1,160], index: 4, kind: input, shape index: {}]
  %s5 = inlined_call_operand.vmem [shape: f32[160,32], index: 5, kind: input, shape index: {}]
  %s6 = inlined_call_operand.vmem [shape: f32[1,32], index: 6, kind: input, shape index: {}]
  %s7 = inlined_call_operand.hbm [shape: f32[16,32], index: 7, kind: output, shape index: {}]
  %s8 = sld [smem:[#allocation0]]
  $region42: #{relunet_forward.1} parent=0
    _
  %s10 = ssub.s32 1, %s8
  %s11 = scalar_select 0, %s10, %s8
  $region1: #{relunet_forward.1} parent=0
    #allocation2 [shape = 'u8[163840]{0}', space=vmem, size = 0x28000, scoped, tag = 'input window, operand 3, single buffered']
    #allocation3 [shape = 's32[1]{0}', space=sflag, size = 0x4, scoped, tag = 'scoped memory for relunet_forward.1']
    #allocation4 [shape = 's32[1]{0}', space=sflag, size = 0x4, scoped, tag = 'scoped memory for relunet_forward.1']
    #allocation5 [shape = 'u8[8192]{0}', space=vmem, size = 0x2000, scoped, tag = 'output window, operand 0, single buffered']
    %12 = vsyncpa [#allocation3], 0
    %13 = vsyncpa [#allocation4], 0
    // Predicated region
    $region2: #{relunet_forward.1} parent=1 // pred_check
      _
    $region3: #{relunet_forward.1} parent=1 // pred_check_branch
      %15 = sbr.rel (0) target = $region5
    $region4: #{relunet_forward.1} parent=1 // pred_region
      _
    $region5: #{relunet_forward.1} parent=1 // pred_fallthru
      _
    // Predicated region
    $region6: #{relunet_forward.1} parent=1 // pred_check
      _
    $region7: #{relunet_forward.1} parent=1 // pred_check_branch
      %17 = sbr.rel (0) target = $region9
    $region8: #{relunet_forward.1} parent=1 // pred_region
      _
    $region9: #{relunet_forward.1} parent=1 // pred_fallthru
      _
    // Predicated region
    $region10: #{relunet_forward.1} parent=1 // pred_check
      _
    $region11: #{relunet_forward.1} parent=1 // pred_check_branch
      %19 = sbr.rel (0) target = $region13
    $region12: #{relunet_forward.1} parent=1 // pred_region
      _
    $region13: #{relunet_forward.1} parent=1 // pred_fallthru
      _
    // Predicated region
    $region14: #{relunet_forward.1} parent=1 // pred_check
      _
    $region15: #{relunet_forward.1} parent=1 // pred_check_branch
      %21 = sbr.rel (0) target = $region17
    $region16: #{relunet_forward.1} parent=1 // pred_region
      %23 = vsyncadd [#allocation3], 0
      %s24 = sshll.u32 %s3, 4
      %s25 = int_to_ptr.hbm [resolvable:$true] %s24
      %s26 = sshll.u32 [#allocation2], 4
      %s27 = int_to_ptr.vmem [resolvable:$true] %s26
      %32 = dma.hbm_to_vmem [thread:$0]  %s25, 5120, %s27, [#allocation3], 256, 256, 16
    $region17: #{relunet_forward.1} parent=1 // pred_fallthru
      _
    // Predicated region
    $region18: #{relunet_forward.1} parent=1 // pred_check
      _
    $region19: #{relunet_forward.1} parent=1 // pred_check_branch
      %34 = sbr.rel (0) target = $region21
    $region20: #{relunet_forward.1} parent=1 // pred_region
      _
    $region21: #{relunet_forward.1} parent=1 // pred_fallthru
      _
    // Predicated region
    $region22: #{relunet_forward.1} parent=1 // pred_check
      _
    $region23: #{relunet_forward.1} parent=1 // pred_check_branch
      %36 = sbr.rel (0) target = $region25
    $region24: #{relunet_forward.1} parent=1 // pred_region
      _
    $region25: #{relunet_forward.1} parent=1 // pred_fallthru
      _
    // Predicated region
    $region26: #{relunet_forward.1} parent=1 // pred_check
      _
    $region27: #{relunet_forward.1} parent=1 // pred_check_branch
      %38 = sbr.rel (0) target = $region29
    $region28: #{relunet_forward.1} parent=1 // pred_region
      _
    $region29: #{relunet_forward.1} parent=1 // pred_fallthru
      _
    // Predicated region
    $region30: #{relunet_forward.1} parent=1 // pred_check
      _
    $region31: #{relunet_forward.1} parent=1 // pred_check_branch
      %40 = sbr.rel (0) target = $region33
    $region32: #{relunet_forward.1} parent=1 // pred_region
      %42 = dma.done [#allocation3], 5120
    $region33: #{relunet_forward.1} parent=1 // pred_fallthru
      _
    %v43 = vld [vmem:[%s0] sm:$0xff]
    %v44 = vld [vmem:[%s0 + $0x8] sm:$0xff]
    %v45 = vld [vmem:[%s1] sm:$0xff]
    %v46 = vld [vmem:[%s1 + $0x8] sm:$0xff]
    %v47 = vld [vmem:[%s1 + $0x10] sm:$0xff]
    %v48 = vld [vmem:[%s1 + $0x18] sm:$0xff]
    %v49 = vld [vmem:[%s2] sm:$0x3]
    %v51 = vperm.slane %v49, 0
    %v52 = vperm.slane %v49, 1
    %vm55 = vcmask 130048
    %v57 = vsel %vm55, %v43, 0
    %v60 = vsel %vm55, %v44, 0
    %62 = vmatpush.msra.mxu0 0.0
    %63 = vmatpush.msra.mxu0 0.0
    %64 = vmatpush.msra.mxu0 0.0
    %65 = vmatpush.msra.mxu0 0.0
    %66 = vmatpush.msra.mxu0 0.0
    %67 = vmatpush.msra.mxu0 0.0
    %68 = vmatpush.msra.mxu0 0.0
    %69 = vmatpush.msra.mxu0 0.0
    %70 = vmatpush.msra.mxu0 0.0
    %71 = vmatpush.msra.mxu0 0.0
    %72 = vmatpush.msra.mxu0 0.0
    %73 = vmatpush.msra.mxu0 0.0
    %74 = vmatpush.msra.mxu0 0.0
    %75 = vmatpush.msra.mxu0 0.0
    %76 = vmatpush.msra.mxu0 %v47
    %77 = vmatpush.msra.mxu0 %v45
    %78 = vmatmul.f32.gmra.mxu0 %v57
    %v79 = vpop.f32.mrf.mxu0
    %v80 = vadd.f32 %v51, %v79
    %81 = vmatmul.f32.gmra.mxu0 %v60
    %v82 = vpop.f32.mrf.mxu0
    %v83 = vadd.f32 %v51, %v82
    %84 = vdwg.mxu0
    %85 = vmatpush.msra.mxu0 0.0
    %86 = vmatpush.msra.mxu0 0.0
    %87 = vmatpush.msra.mxu0 0.0
    %88 = vmatpush.msra.mxu0 0.0
    %89 = vmatpush.msra.mxu0 0.0
    %90 = vmatpush.msra.mxu0 0.0
    %91 = vmatpush.msra.mxu0 0.0
    %92 = vmatpush.msra.mxu0 0.0
    %93 = vmatpush.msra.mxu0 0.0
    %94 = vmatpush.msra.mxu0 0.0
    %95 = vmatpush.msra.mxu0 0.0
    %96 = vmatpush.msra.mxu0 0.0
    %97 = vmatpush.msra.mxu0 0.0
    %98 = vmatpush.msra.mxu0 0.0
    %99 = vmatpush.msra.mxu0 %v48
    %100 = vmatpush.msra.mxu0 %v46
    %101 = vmatmul.f32.gmra.mxu0 %v57
    %v102 = vpop.f32.mrf.mxu0
    %v103 = vadd.f32 %v52, %v102
    %104 = vmatmul.f32.gmra.mxu0 %v60
    %v105 = vpop.f32.mrf.mxu0
    %v106 = vadd.f32 %v52, %v105
    %107 = vdwg.mxu0
    %v108 = vmax.f32 %v80, 0.0
    %v109 = vmax.f32 %v103, 0.0
    %v110 = vmax.f32 %v83, 0.0
    %v111 = vmax.f32 %v106, 0.0
    %v112 = vld [vmem:[#allocation2] sm:$0xff]
    %v113 = vld [vmem:[#allocation2 + $0x8] sm:$0xff]
    %v114 = vld [vmem:[#allocation2 + $0x10] sm:$0xff]
    %v115 = vld [vmem:[#allocation2 + $0x18] sm:$0xff]
    %v116 = vld [vmem:[#allocation2 + $0x20] sm:$0xff]
    %v117 = vld [vmem:[#allocation2 + $0x28] sm:$0xff]
    %v118 = vld [vmem:[#allocation2 + $0x30] sm:$0xff]
    %v119 = vld [vmem:[#allocation2 + $0x38] sm:$0xff]
    %v120 = vld [vmem:[#allocation2 + $0x40] sm:$0xff]
    %v121 = vld [vmem:[#allocation2 + $0x48] sm:$0xff]
    %v122 = vld [vmem:[#allocation2 + $0x50] sm:$0xff]
    %v123 = vld [vmem:[#allocation2 + $0x58] sm:$0xff]
    %v124 = vld [vmem:[#allocation2 + $0x60] sm:$0xff]
    %v125 = vld [vmem:[#allocation2 + $0x68] sm:$0xff]
    %v126 = vld [vmem:[#allocation2 + $0x70] sm:$0xff]
    %v127 = vld [vmem:[#allocation2 + $0x78] sm:$0xff]
    %v128 = vld [vmem:[#allocation2 + $0x80] sm:$0xff]
    %v129 = vld [vmem:[#allocation2 + $0x88] sm:$0xff]
    %v130 = vld [vmem:[#allocation2 + $0x90] sm:$0xff]
    %v131 = vld [vmem:[#allocation2 + $0x98] sm:$0xff]
    %v132 = vld [vmem:[#allocation2 + $0xa0] sm:$0xff]
    %v133 = vld [vmem:[#allocation2 + $0xa8] sm:$0xff]
    %v134 = vld [vmem:[#allocation2 + $0xb0] sm:$0xff]
    %v135 = vld [vmem:[#allocation2 + $0xb8] sm:$0xff]
    %v136 = vld [vmem:[#allocation2 + $0xc0] sm:$0xff]
    %v137 = vld [vmem:[#allocation2 + $0xc8] sm:$0xff]
    %v138 = vld [vmem:[#allocation2 + $0xd0] sm:$0xff]
    %v139 = vld [vmem:[#allocation2 + $0xd8] sm:$0xff]
    %v140 = vld [vmem:[#allocation2 + $0xe0] sm:$0xff]
    %v141 = vld [vmem:[#allocation2 + $0xe8] sm:$0xff]
    %v142 = vld [vmem:[#allocation2 + $0xf0] sm:$0xff]
    %v143 = vld [vmem:[#allocation2 + $0xf8] sm:$0xff]
    %v144 = vld [vmem:[#allocation2 + $0x100] sm:$0xff]
    %v145 = vld [vmem:[#allocation2 + $0x108] sm:$0xff]
    %v146 = vld [vmem:[#allocation2 + $0x110] sm:$0xff]
    %v147 = vld [vmem:[#allocation2 + $0x118] sm:$0xff]
    %v148 = vld [vmem:[#allocation2 + $0x120] sm:$0xff]
    %v149 = vld [vmem:[#allocation2 + $0x128] sm:$0xff]
    %v150 = vld [vmem:[#allocation2 + $0x130] sm:$0xff]
    %v151 = vld [vmem:[#allocation2 + $0x138] sm:$0xff]
    %v152 = vld [vmem:[%s4] sm:$0x3]
    %v154 = vperm.slane %v152, 0
    %v155 = vperm.slane %v152, 1
    %vm158 = vcmask 261120
    %v160 = vsel %vm158, %v109, 0
    %v163 = vsel %vm158, %v111, 0
    %165 = vmatpush.msra.mxu0 %v142
    %166 = vmatpush.msra.mxu0 %v140
    %167 = vmatpush.msra.mxu0 %v138
    %168 = vmatpush.msra.mxu0 %v136
    %169 = vmatpush.msra.mxu0 %v134
    %170 = vmatpush.msra.mxu0 %v132
    %171 = vmatpush.msra.mxu0 %v130
    %172 = vmatpush.msra.mxu0 %v128
    %173 = vmatpush.msra.mxu0 %v126
    %174 = vmatpush.msra.mxu0 %v124
    %175 = vmatpush.msra.mxu0 %v122
    %176 = vmatpush.msra.mxu0 %v120
    %177 = vmatpush.msra.mxu0 %v118
    %178 = vmatpush.msra.mxu0 %v116
    %179 = vmatpush.msra.mxu0 %v114
    %180 = vmatpush.msra.mxu0 %v112
    %181 = vmatmul.f32.gmra.mxu0 %v108
    %v182 = vpop.f32.mrf.mxu0
    %v183 = vadd.f32 %v154, %v182
    %184 = vmatmul.f32.gmra.mxu0 %v110
    %v185 = vpop.f32.mrf.mxu0
    %v186 = vadd.f32 %v154, %v185
    %187 = vdwg.mxu0
    %188 = vmatpush.msra.mxu0 0.0
    %189 = vmatpush.msra.mxu0 0.0
    %190 = vmatpush.msra.mxu0 0.0
    %191 = vmatpush.msra.mxu0 0.0
    %192 = vmatpush.msra.mxu0 0.0
    %193 = vmatpush.msra.mxu0 0.0
    %194 = vmatpush.msra.mxu0 0.0
    %195 = vmatpush.msra.mxu0 0.0
    %196 = vmatpush.msra.mxu0 0.0
    %197 = vmatpush.msra.mxu0 0.0
    %198 = vmatpush.msra.mxu0 0.0
    %199 = vmatpush.msra.mxu0 0.0
    %200 = vmatpush.msra.mxu0 %v150
    %201 = vmatpush.msra.mxu0 %v148
    %202 = vmatpush.msra.mxu0 %v146
    %203 = vmatpush.msra.mxu0 %v144
    %204 = vmatmul.f32.gmra.mxu0 %v160
    %v205 = vpop.f32.mrf.mxu0
    %v206 = vadd.f32 %v183, %v205
    %207 = vmatmul.f32.gmra.mxu0 %v163
    %v208 = vpop.f32.mrf.mxu0
    %v209 = vadd.f32 %v186, %v208
    %210 = vdwg.mxu0
    %211 = vmatpush.msra.mxu0 %v143
    %212 = vmatpush.msra.mxu0 %v141
    %213 = vmatpush.msra.mxu0 %v139
    %214 = vmatpush.msra.mxu0 %v137
    %215 = vmatpush.msra.mxu0 %v135
    %216 = vmatpush.msra.mxu0 %v133
    %217 = vmatpush.msra.mxu0 %v131
    %218 = vmatpush.msra.mxu0 %v129
    %219 = vmatpush.msra.mxu0 %v127
    %220 = vmatpush.msra.mxu0 %v125
    %221 = vmatpush.msra.mxu0 %v123
    %222 = vmatpush.msra.mxu0 %v121
    %223 = vmatpush.msra.mxu0 %v119
    %224 = vmatpush.msra.mxu0 %v117
    %225 = vmatpush.msra.mxu0 %v115
    %226 = vmatpush.msra.mxu0 %v113
    %227 = vmatmul.f32.gmra.mxu0 %v108
    %v228 = vpop.f32.mrf.mxu0
    %v229 = vadd.f32 %v155, %v228
    %230 = vmatmul.f32.gmra.mxu0 %v110
    %v231 = vpop.f32.mrf.mxu0
    %v232 = vadd.f32 %v155, %v231
    %233 = vdwg.mxu0
    %234 = vmatpush.msra.mxu0 0.0
    %235 = vmatpush.msra.mxu0 0.0
    %236 = vmatpush.msra.mxu0 0.0
    %237 = vmatpush.msra.mxu0 0.0
    %238 = vmatpush.msra.mxu0 0.0
    %239 = vmatpush.msra.mxu0 0.0
    %240 = vmatpush.msra.mxu0 0.0
    %241 = vmatpush.msra.mxu0 0.0
    %242 = vmatpush.msra.mxu0 0.0
    %243 = vmatpush.msra.mxu0 0.0
    %244 = vmatpush.msra.mxu0 0.0
    %245 = vmatpush.msra.mxu0 0.0
    %246 = vmatpush.msra.mxu0 %v151
    %247 = vmatpush.msra.mxu0 %v149
    %248 = vmatpush.msra.mxu0 %v147
    %249 = vmatpush.msra.mxu0 %v145
    %250 = vmatmul.f32.gmra.mxu0 %v160
    %v251 = vpop.f32.mrf.mxu0
    %v252 = vadd.f32 %v229, %v251
    %253 = vmatmul.f32.gmra.mxu0 %v163
    %v254 = vpop.f32.mrf.mxu0
    %v255 = vadd.f32 %v232, %v254
    %256 = vdwg.mxu0
    %v257 = vmax.f32 %v206, 0.0
    %v258 = vmax.f32 %v252, 0.0
    %v259 = vmax.f32 %v209, 0.0
    %v260 = vmax.f32 %v255, 0.0
    %v261 = vld [vmem:[%s5] sm:$0xff]
    %v262 = vld [vmem:[%s5 + $0x8] sm:$0xff]
    %v263 = vld [vmem:[%s5 + $0x10] sm:$0xff]
    %v264 = vld [vmem:[%s5 + $0x18] sm:$0xff]
    %v265 = vld [vmem:[%s5 + $0x20] sm:$0xff]
    %v266 = vld [vmem:[%s5 + $0x28] sm:$0xff]
    %v267 = vld [vmem:[%s5 + $0x30] sm:$0xff]
    %v268 = vld [vmem:[%s5 + $0x38] sm:$0xff]
    %v269 = vld [vmem:[%s5 + $0x40] sm:$0xff]
    %v270 = vld [vmem:[%s5 + $0x48] sm:$0xff]
    %v271 = vld [vmem:[%s5 + $0x50] sm:$0xff]
    %v272 = vld [vmem:[%s5 + $0x58] sm:$0xff]
    %v273 = vld [vmem:[%s5 + $0x60] sm:$0xff]
    %v274 = vld [vmem:[%s5 + $0x68] sm:$0xff]
    %v275 = vld [vmem:[%s5 + $0x70] sm:$0xff]
    %v276 = vld [vmem:[%s5 + $0x78] sm:$0xff]
    %v277 = vld [vmem:[%s5 + $0x80] sm:$0xff]
    %v278 = vld [vmem:[%s5 + $0x88] sm:$0xff]
    %v279 = vld [vmem:[%s5 + $0x90] sm:$0xff]
    %v280 = vld [vmem:[%s5 + $0x98] sm:$0xff]
    %v281 = vld [vmem:[%s6] sm:$0x1]
    %v283 = vperm.slane %v281, 0
    %v286 = vsel %vm158, %v258, 0
    %v289 = vsel %vm158, %v260, 0
    %291 = vmatpush.msra.mxu0 %v276
    %292 = vmatpush.msra.mxu0 %v275
    %293 = vmatpush.msra.mxu0 %v274
    %294 = vmatpush.msra.mxu0 %v273
    %295 = vmatpush.msra.mxu0 %v272
    %296 = vmatpush.msra.mxu0 %v271
    %297 = vmatpush.msra.mxu0 %v270
    %298 = vmatpush.msra.mxu0 %v269
    %299 = vmatpush.msra.mxu0 %v268
    %300 = vmatpush.msra.mxu0 %v267
    %301 = vmatpush.msra.mxu0 %v266
    %302 = vmatpush.msra.mxu0 %v265
    %303 = vmatpush.msra.mxu0 %v264
    %304 = vmatpush.msra.mxu0 %v263
    %305 = vmatpush.msra.mxu0 %v262
    %306 = vmatpush.msra.mxu0 %v261
    %307 = vmatmul.f32.gmra.mxu0 %v257
    %v308 = vpop.f32.mrf.mxu0
    %v309 = vadd.f32 %v283, %v308
    %310 = vmatmul.f32.gmra.mxu0 %v259
    %v311 = vpop.f32.mrf.mxu0
    %v312 = vadd.f32 %v283, %v311
    %313 = vdwg.mxu0
    %314 = vmatpush.msra.mxu0 0.0
    %315 = vmatpush.msra.mxu0 0.0
    %316 = vmatpush.msra.mxu0 0.0
    %317 = vmatpush.msra.mxu0 0.0
    %318 = vmatpush.msra.mxu0 0.0
    %319 = vmatpush.msra.mxu0 0.0
    %320 = vmatpush.msra.mxu0 0.0
    %321 = vmatpush.msra.mxu0 0.0
    %322 = vmatpush.msra.mxu0 0.0
    %323 = vmatpush.msra.mxu0 0.0
    %324 = vmatpush.msra.mxu0 0.0
    %325 = vmatpush.msra.mxu0 0.0
    %326 = vmatpush.msra.mxu0 %v280
    %327 = vmatpush.msra.mxu0 %v279
    %328 = vmatpush.msra.mxu0 %v278
    %329 = vmatpush.msra.mxu0 %v277
    %330 = vmatmul.f32.gmra.mxu0 %v286
    %v331 = vpop.f32.mrf.mxu0
    %v332 = vadd.f32 %v309, %v331
    %333 = vmatmul.f32.gmra.mxu0 %v289
    %v334 = vpop.f32.mrf.mxu0
    %v335 = vadd.f32 %v312, %v334
    %336 = vdwg.mxu0
    %337 = vst.msk [vmem:[#allocation5] sm:$0xff] %vm158, %v332
    %338 = vst.msk [vmem:[#allocation5 + $0x8] sm:$0xff] %vm158, %v335
    // Predicated region
    $region34: #{relunet_forward.1} parent=1 // pred_check
      _
    $region35: #{relunet_forward.1} parent=1 // pred_check_branch
      %340 = sbr.rel (0) target = $region37
    $region36: #{relunet_forward.1} parent=1 // pred_region
      %342 = vsyncadd [#allocation4], 0
      %s343 = sshll.u32 [#allocation5], 4
      %s344 = int_to_ptr.vmem [resolvable:$true] %s343
      %s345 = sshll.u32 %s7, 4
      %s346 = int_to_ptr.hbm [resolvable:$true] %s345
      %351 = dma.vmem_to_hbm [thread:$0]  %s344, 256, %s346, [#allocation4], 128, 128, 8
    $region37: #{relunet_forward.1} parent=1 // pred_fallthru
      _
    // Predicated region
    $region38: #{relunet_forward.1} parent=1 // pred_check
      _
    $region39: #{relunet_forward.1} parent=1 // pred_check_branch
      %353 = sbr.rel (0) target = $region41
    $region40: #{relunet_forward.1} parent=1 // pred_region
      %355 = dma.done [#allocation4], 256
    $region41: #{relunet_forward.1} parent=1 // pred_fallthru
      _
    %356 = vsyncpa [#allocation3], 1
    %357 = vsyncpa [#allocation4], 1

</llo_original>
